<compile_context>
chip_gen: v7x
topology: tpu7x:2x2x1
jax: 0.10.0
libtpu: 0.0.40
codegen_flags: <defaults>
</compile_context>

<pallas_src>
import functools

import jax
import jax.numpy as jnp
from jax import lax
from jax.experimental import pallas as pl
from jax.experimental.pallas import tpu as pltpu

HIDDEN = (128, 64, 32)


def _mlp_kernel(x_ref,
                w1_ref, b1_ref,
                w2_ref, b2_ref,
                w3_ref, b3_ref,
                w4_ref, b4_ref,
                o_ref):
    # x tile arrives in its natural (block_b, D_in) layout.  Layer 1 contracts on
    # x's last dim (an implicit transpose on the MXU), so no wrapper-side
    # transpose/cast and no extra HBM pass over x.  From here on activations are
    # feature-major (features, block_b), which makes the final layer's output a
    # lane-dense (1, block_b) row -> unmasked stores.
    x = x_ref[...]                                                        # (bb, D_in) f32

    # Layer 1 in f32 (K = D_in is tiny; negligible cost, tighter parity).
    h = lax.dot_general(w1_ref[...], x,
                        dimension_numbers=(((1,), (1,)), ((), ())),
                        preferred_element_type=jnp.float32)               # (128, bb)
    h = jnp.maximum(h + b1_ref[...], 0.0)

    # Layers 2/3: bf16 MXU operands, f32 accumulation / bias / ReLU.
    h = jnp.maximum(
        jnp.dot(w2_ref[...], h.astype(w2_ref.dtype),
                preferred_element_type=jnp.float32) + b2_ref[...], 0.0)   # (64, bb)
    h = jnp.maximum(
        jnp.dot(w3_ref[...], h.astype(w3_ref.dtype),
                preferred_element_type=jnp.float32) + b3_ref[...], 0.0)   # (32, bb)

    # Layer 4 (32 -> 1): VPU multiply + XLU sublane reduction (an N=1 MXU matmul
    # would waste a full MXU pass).  Result is a lane-dense (1, block_b) row.
    out = jnp.sum(w4_ref[...] * h, axis=0, keepdims=True) + b4_ref[...]   # (1, bb)
    o_ref[...] = jnp.maximum(out, 0.0).astype(o_ref.dtype)


def _round_up(x, m):
    return (x + m - 1) // m * m


def _pick_block_b(batch, max_tile=4096):
    """Largest useful batch tile: single-step grid on single-TC chips (v5e/v6e),
    at least 2 grid steps on v7x so both TensorCores get work."""
    try:
        kind = jax.devices()[0].device_kind.lower()
    except Exception:  # pragma: no cover - defensive
        kind = ""
    multi_tc = ("v7" in kind) or ("7x" in kind)
    if multi_tc and batch > 128:
        bb = _round_up(pl.cdiv(batch, 2), 128)   # keep both TensorCores busy
    else:
        bb = _round_up(batch, 128)               # one grid step when it fits
    return int(max(128, min(bb, max_tile)))


@functools.partial(jax.jit, static_argnames=("block_b", "compute_dtype"))
def freight_cost_predictor(x, params, *, block_b=None, compute_dtype=jnp.bfloat16):
    """x: (B, input_size) float32. params: see init_params. Returns (B, 1)."""
    B, D_in = x.shape
    if block_b is None:
        block_b = _pick_block_b(B)
    cdt = jnp.dtype(compute_dtype)

    # PyTorch (out, in) weight layout; layer 1 stays f32, layers 2/3 bf16 for MXU.
    w1 = params["w1"].astype(jnp.float32)               # (128, D_in)
    w2 = params["w2"].astype(cdt)                       # (64, 128)
    w3 = params["w3"].astype(cdt)                       # (32, 64)
    w4 = params["w4"].astype(jnp.float32)               # (32, 1)   VPU path, stays f32
    b1 = params["b1"].astype(jnp.float32)               # (128, 1)
    b2 = params["b2"].astype(jnp.float32)               # (64, 1)
    b3 = params["b3"].astype(jnp.float32)               # (32, 1)
    b4 = params["b4"].astype(jnp.float32)               # (1, 1)

    grid = (pl.cdiv(B, block_b),)

    def replicated(a):
        # Tiny weights/biases: constant index map -> fetched once, stay resident.
        return pl.BlockSpec(a.shape, lambda i: (0,) * a.ndim)

    h1, h2, h3 = HIDDEN
    flops = 2 * B * (D_in * h1 + h1 * h2 + h2 * h3 + h3 * 1)
    bytes_accessed = (int(x.size) * 4                        # x read once, in f32
                      + sum(int(a.size) * a.dtype.itemsize
                            for a in (w1, w2, w3, w4, b1, b2, b3, b4))
                      + B * 4)                               # (B,) f32 output

    out_t = pl.pallas_call(
        _mlp_kernel,
        out_shape=jax.ShapeDtypeStruct((1, B), jnp.float32),   # lane-dense output slab
        grid_spec=pl.GridSpec(
            grid=grid,
            in_specs=[
                pl.BlockSpec((block_b, D_in), lambda i: (i, 0)),  # natural-layout x tile
                replicated(w1), replicated(b1),
                replicated(w2), replicated(b2),
                replicated(w3), replicated(b3),
                replicated(w4), replicated(b4),
            ],
            out_specs=pl.BlockSpec((1, block_b), lambda i: (0, i)),
        ),
        compiler_params=pltpu.CompilerParams(
            dimension_semantics=("parallel",)),
        cost_estimate=pl.CostEstimate(
            flops=flops, transcendentals=0, bytes_accessed=bytes_accessed),
    )(x.astype(jnp.float32), w1, b1, w2, b2, w3, b3, w4, b4)

    return out_t.reshape(B, 1).astype(x.dtype)


def init_params(key, input_size):
    """PyTorch nn.Linear-style init (uniform +/- 1/sqrt(fan_in)).

    Layouts chosen for the feature-major kernel:
      w1: (128, input_size), w2: (64, 128), w3: (32, 64)   -- PyTorch (out, in) layout
      w4: (32, 1)                                          -- fc4.weight transposed
      b1..b3: (out, 1) columns, b4: (1, 1)
    """
    dims = [input_size] + list(HIDDEN) + [1]
    params = {}
    for idx in range(1, 5):
        fan_in, fan_out = dims[idx - 1], dims[idx]
        key, kw, kb = jax.random.split(key, 3)
        bound = float(fan_in) ** -0.5
        w = jax.random.uniform(kw, (fan_out, fan_in), jnp.float32, -bound, bound)
        b = jax.random.uniform(kb, (fan_out, 1), jnp.float32, -bound, bound)
        if idx == 4:
            w = w.T  # (32, 1) so the kernel broadcasts it over lanes
        params[f"w{idx}"] = w
        params[f"b{idx}"] = b
    return params


def reference_forward(x, params, compute_dtype=jnp.float32):
    """Pure-JAX reference of the nn.Module forward.  With compute_dtype=bf16 it
    mirrors the kernel's precision recipe (layer 1 fully f32, layers 2/3 bf16 MXU
    operands with f32 accumulation, f32 bias/ReLU, last layer fully in f32)."""
    cdt = jnp.dtype(compute_dtype)
    h = x.astype(jnp.float32)
    for i in (1, 2, 3):
        w, b = params[f"w{i}"], params[f"b{i}"]
        layer_dt = jnp.float32 if i == 1 else cdt
        acc = jnp.dot(h.astype(layer_dt), w.T.astype(layer_dt),
                      preferred_element_type=jnp.float32)
        h = jnp.maximum(acc + b[:, 0][None, :], 0.0)
    out = (jnp.dot(h, params["w4"], preferred_element_type=jnp.float32)
           + params["b4"][0, 0])
    return jnp.maximum(out, 0.0)   # ReLU after the final layer, as in the spec


if __name__ == "__main__":
    key = jax.random.PRNGKey(0)
    input_size = 16
    batch = 512   # 1 grid step on v5e/v6e, 2 steps (both TensorCores) on v7x

    kx, kp = jax.random.split(key)
    x = jax.random.normal(kx, (batch, input_size), jnp.float32)
    params = init_params(kp, input_size)

    out = freight_cost_predictor(x, params)
    out = jax.block_until_ready(out)
    assert out.shape == (batch, 1)

    # Tight check against a reference using the same mixed-precision recipe.
    ref_mixed = reference_forward(x, params, compute_dtype=jnp.bfloat16)
    assert jnp.allclose(out, ref_mixed, atol=2e-3, rtol=2e-3), \
        float(jnp.max(jnp.abs(out - ref_mixed)))

    # Looser check against the pure-f32 PyTorch-equivalent forward.
    ref_f32 = reference_forward(x, params, compute_dtype=jnp.float32)
    assert jnp.allclose(out, ref_f32, atol=5e-2, rtol=5e-2), \
        float(jnp.max(jnp.abs(out - ref_f32)))

    print("KERNEL_OK")
</pallas_src>

<mosaic_0001>
module attributes {stable_mosaic.version = 11 : i64} {
  func.func @_mlp_kernel(%arg0: i32, %arg1: memref<512x16xf32, #tpu.memory_space<vmem>>, %arg2: memref<128x16xf32, #tpu.memory_space<vmem>>, %arg3: memref<128x1xf32, #tpu.memory_space<vmem>>, %arg4: memref<64x128xbf16, #tpu.memory_space<vmem>>, %arg5: memref<64x1xf32, #tpu.memory_space<vmem>>, %arg6: memref<32x64xbf16, #tpu.memory_space<vmem>>, %arg7: memref<32x1xf32, #tpu.memory_space<vmem>>, %arg8: memref<32x1xf32, #tpu.memory_space<vmem>>, %arg9: memref<1x1xf32, #tpu.memory_space<vmem>>, %arg10: memref<1x512xf32, #tpu.memory_space<vmem>>) attributes {dimension_semantics = [#tpu.dimension_semantics<parallel>], iteration_bounds = array<i64: 1>, scalar_prefetch = 0 : i64, scratch_operands = 0 : i64, tpu.core_type = #tpu.core_type<tc>, window_params = [{transform_indices = @transform_0, window_bounds = array<i64: 512, 16>}, {pipeline_mode = #tpu.pipeline_mode<synchronous>, transform_indices = @transform_1, window_bounds = array<i64: 128, 16>}, {pipeline_mode = #tpu.pipeline_mode<synchronous>, transform_indices = @transform_2, window_bounds = array<i64: 128, 1>}, {pipeline_mode = #tpu.pipeline_mode<synchronous>, transform_indices = @transform_3, window_bounds = array<i64: 64, 128>}, {pipeline_mode = #tpu.pipeline_mode<synchronous>, transform_indices = @transform_4, window_bounds = array<i64: 64, 1>}, {pipeline_mode = #tpu.pipeline_mode<synchronous>, transform_indices = @transform_5, window_bounds = array<i64: 32, 64>}, {pipeline_mode = #tpu.pipeline_mode<synchronous>, transform_indices = @transform_6, window_bounds = array<i64: 32, 1>}, {pipeline_mode = #tpu.pipeline_mode<synchronous>, transform_indices = @transform_7, window_bounds = array<i64: 32, 1>}, {pipeline_mode = #tpu.pipeline_mode<synchronous>, transform_indices = @transform_8, window_bounds = array<i64: 1, 1>}, {transform_indices = @transform_9, window_bounds = array<i64: 1, 512>}]} {
    %c0 = arith.constant 0 : index
    %c0_0 = arith.constant 0 : index
    %0 = vector.load %arg1[%c0, %c0_0] : memref<512x16xf32, #tpu.memory_space<vmem>>, vector<512x16xf32>
    %c0_1 = arith.constant 0 : index
    %c0_2 = arith.constant 0 : index
    %1 = vector.load %arg2[%c0_1, %c0_2] : memref<128x16xf32, #tpu.memory_space<vmem>>, vector<128x16xf32>
    %cst = arith.constant dense<0.000000e+00> : vector<128x512xf32>
    %2 = tpu.matmul %1, %0, %cst {dimension_numbers = #tpu.dot_dimension_numbers<[1], [1], [0], [0], [0, 0, 1, 0], [], []>} : vector<128x16xf32>, vector<512x16xf32>, vector<128x512xf32> -> vector<128x512xf32>
    %c0_3 = arith.constant 0 : index
    %c0_4 = arith.constant 0 : index
    %3 = vector.load %arg3[%c0_3, %c0_4] : memref<128x1xf32, #tpu.memory_space<vmem>>, vector<128x1xf32>
    %4 = vector.broadcast %3 : vector<128x1xf32> to vector<128x512xf32>
    %5 = arith.addf %2, %4 : vector<128x512xf32>
    %cst_5 = arith.constant 0.000000e+00 : f32
    %6 = vector.broadcast %cst_5 : f32 to vector<128x512xf32>
    %7 = arith.maximumf %5, %6 : vector<128x512xf32>
    %c0_6 = arith.constant 0 : index
    %c0_7 = arith.constant 0 : index
    %8 = vector.load %arg4[%c0_6, %c0_7] : memref<64x128xbf16, #tpu.memory_space<vmem>>, vector<64x128xbf16>
    %9 = arith.truncf %7 : vector<128x512xf32> to vector<128x512xbf16>
    %cst_8 = arith.constant dense<0.000000e+00> : vector<64x512xf32>
    %10 = tpu.matmul %8, %9, %cst_8 {dimension_numbers = #tpu.dot_dimension_numbers<[1], [0], [0], [1], [0, 0, 1, 1], [], []>} : vector<64x128xbf16>, vector<128x512xbf16>, vector<64x512xf32> -> vector<64x512xf32>
    %c0_9 = arith.constant 0 : index
    %c0_10 = arith.constant 0 : index
    %11 = vector.load %arg5[%c0_9, %c0_10] : memref<64x1xf32, #tpu.memory_space<vmem>>, vector<64x1xf32>
    %12 = vector.broadcast %11 : vector<64x1xf32> to vector<64x512xf32>
    %13 = arith.addf %10, %12 : vector<64x512xf32>
    %cst_11 = arith.constant 0.000000e+00 : f32
    %14 = vector.broadcast %cst_11 : f32 to vector<64x512xf32>
    %15 = arith.maximumf %13, %14 : vector<64x512xf32>
    %c0_12 = arith.constant 0 : index
    %c0_13 = arith.constant 0 : index
    %16 = vector.load %arg6[%c0_12, %c0_13] : memref<32x64xbf16, #tpu.memory_space<vmem>>, vector<32x64xbf16>
    %17 = arith.truncf %15 : vector<64x512xf32> to vector<64x512xbf16>
    %cst_14 = arith.constant dense<0.000000e+00> : vector<32x512xf32>
    %18 = tpu.matmul %16, %17, %cst_14 {dimension_numbers = #tpu.dot_dimension_numbers<[1], [0], [0], [1], [0, 0, 1, 1], [], []>} : vector<32x64xbf16>, vector<64x512xbf16>, vector<32x512xf32> -> vector<32x512xf32>
    %c0_15 = arith.constant 0 : index
    %c0_16 = arith.constant 0 : index
    %19 = vector.load %arg7[%c0_15, %c0_16] : memref<32x1xf32, #tpu.memory_space<vmem>>, vector<32x1xf32>
    %20 = vector.broadcast %19 : vector<32x1xf32> to vector<32x512xf32>
    %21 = arith.addf %18, %20 : vector<32x512xf32>
    %cst_17 = arith.constant 0.000000e+00 : f32
    %22 = vector.broadcast %cst_17 : f32 to vector<32x512xf32>
    %23 = arith.maximumf %21, %22 : vector<32x512xf32>
    %c0_18 = arith.constant 0 : index
    %c0_19 = arith.constant 0 : index
    %24 = vector.load %arg8[%c0_18, %c0_19] : memref<32x1xf32, #tpu.memory_space<vmem>>, vector<32x1xf32>
    %25 = vector.broadcast %24 : vector<32x1xf32> to vector<32x512xf32>
    %26 = arith.mulf %25, %23 : vector<32x512xf32>
    %cst_20 = arith.constant dense<0.000000e+00> : vector<512xf32>
    %27 = vector.multi_reduction <add>, %26, %cst_20 [0] : vector<32x512xf32> to vector<512xf32>
    %28 = vector.shape_cast %27 : vector<512xf32> to vector<1x512xf32>
    %c0_21 = arith.constant 0 : index
    %c0_22 = arith.constant 0 : index
    %29 = vector.load %arg9[%c0_21, %c0_22] : memref<1x1xf32, #tpu.memory_space<vmem>>, vector<1x1xf32>
    %30 = vector.broadcast %29 : vector<1x1xf32> to vector<1x512xf32>
    %31 = arith.addf %28, %30 : vector<1x512xf32>
    %cst_23 = arith.constant 0.000000e+00 : f32
    %32 = vector.broadcast %cst_23 : f32 to vector<1x512xf32>
    %33 = arith.maximumf %31, %32 : vector<1x512xf32>
    %c0_24 = arith.constant 0 : index
    %c0_25 = arith.constant 0 : index
    %34 = vector.load %arg10[%c0_24, %c0_25] : memref<1x512xf32, #tpu.memory_space<vmem>>, vector<1x512xf32>
    tpu.vector_store %arg10[%c0_24, %c0_25], %33 {strides = array<i32>} : memref<1x512xf32, #tpu.memory_space<vmem>>, vector<1x512xf32>,
    return
  }
  func.func @transform_0(%arg0: i32) -> (i32, i32) {
    %c0_i32 = arith.constant 0 : i32
    %c0_i32_0 = arith.constant 0 : i32
    return %arg0, %c0_i32 : i32, i32
  }
  func.func @transform_1(%arg0: i32) -> (i32, i32) {
    %c0_i32 = arith.constant 0 : i32
    %c0_i32_0 = arith.constant 0 : i32
    %c0_i32_1 = arith.constant 0 : i32
    return %c0_i32, %c0_i32_0 : i32, i32
  }
  func.func @transform_2(%arg0: i32) -> (i32, i32) {
    %c0_i32 = arith.constant 0 : i32
    %c0_i32_0 = arith.constant 0 : i32
    %c0_i32_1 = arith.constant 0 : i32
    return %c0_i32, %c0_i32_0 : i32, i32
  }
  func.func @transform_3(%arg0: i32) -> (i32, i32) {
    %c0_i32 = arith.constant 0 : i32
    %c0_i32_0 = arith.constant 0 : i32
    %c0_i32_1 = arith.constant 0 : i32
    return %c0_i32, %c0_i32_0 : i32, i32
  }
  func.func @transform_4(%arg0: i32) -> (i32, i32) {
    %c0_i32 = arith.constant 0 : i32
    %c0_i32_0 = arith.constant 0 : i32
    %c0_i32_1 = arith.constant 0 : i32
    return %c0_i32, %c0_i32_0 : i32, i32
  }
  func.func @transform_5(%arg0: i32) -> (i32, i32) {
    %c0_i32 = arith.constant 0 : i32
    %c0_i32_0 = arith.constant 0 : i32
    %c0_i32_1 = arith.constant 0 : i32
    return %c0_i32, %c0_i32_0 : i32, i32
  }
  func.func @transform_6(%arg0: i32) -> (i32, i32) {
    %c0_i32 = arith.constant 0 : i32
    %c0_i32_0 = arith.constant 0 : i32
    %c0_i32_1 = arith.constant 0 : i32
    return %c0_i32, %c0_i32_0 : i32, i32
  }
  func.func @transform_7(%arg0: i32) -> (i32, i32) {
    %c0_i32 = arith.constant 0 : i32
    %c0_i32_0 = arith.constant 0 : i32
    %c0_i32_1 = arith.constant 0 : i32
    return %c0_i32, %c0_i32_0 : i32, i32
  }
  func.func @transform_8(%arg0: i32) -> (i32, i32) {
    %c0_i32 = arith.constant 0 : i32
    %c0_i32_0 = arith.constant 0 : i32
    %c0_i32_1 = arith.constant 0 : i32
    return %c0_i32, %c0_i32_0 : i32, i32
  }
  func.func @transform_9(%arg0: i32) -> (i32, i32) {
    %c0_i32 = arith.constant 0 : i32
    %c0_i32_0 = arith.constant 0 : i32
    return %c0_i32, %arg0 : i32, i32
  }
}

</mosaic_0001>

<llo_original>
// kernel: freight_cost_predictor.1
$region0: #{freight_cost_predictor.1}
  #allocation0 [shape = 'u32[]', space=smem, size = 0x4, offset = 0x4, fixed_abs, tag = 'smem constant byte address 0x4 - core index']
  #allocation1 [shape = 'u32[144,128]{1,0:T(1,128)}', space=vmem, size = 0x12000, scoped, tag = 'internal scratch']
  #allocation2 [shape = 'f32[1,1]{1,0:T(1,128)S(1)}', space=vmem, size = 0x200, scoped, tag = 'scoped memory for freight_cost_predictor.1']
  %s0 = inlined_call_operand.vmem [shape: f32[512,16], index: 0, kind: input, shape index: {}]
  %s1 = inlined_call_operand.vmem [shape: f32[128,16], index: 1, kind: input, shape index: {}]
  %s2 = inlined_call_operand.vmem [shape: f32[128,1], index: 2, kind: input, shape index: {}]
  %s3 = inlined_call_operand.vmem [shape: bf16[64,128], index: 3, kind: input, shape index: {}]
  %s4 = inlined_call_operand.vmem [shape: f32[64,1], index: 4, kind: input, shape index: {}]
  %s5 = inlined_call_operand.vmem [shape: bf16[32,64], index: 5, kind: input, shape index: {}]
  %s6 = inlined_call_operand.vmem [shape: f32[32,1], index: 6, kind: input, shape index: {}]
  %s7 = inlined_call_operand.vmem [shape: f32[32,1], index: 7, kind: input, shape index: {}]
  %s8 = inlined_call_operand.<no memory space> [shape: f32[1,1], index: 8, kind: input, shape index: {}]
  %s9 = inlined_call_operand.hbm [shape: f32[1,512], index: 9, kind: output, shape index: {}]
  %s10 = sld [smem:[#allocation0]]
  $region46: #{freight_cost_predictor.1} parent=0
    _
  %s12 = ssub.s32 1, %s10
  %s13 = scalar_select 0, %s12, %s10
  %v14 = vstv %s8
  %15 = vst [vmem:[#allocation2] sm:$0x1] %v14
  $region1: #{freight_cost_predictor.1} parent=0
    #allocation3 [shape = 'u8[2048]{0}', space=vmem, size = 0x800, scoped, tag = 'output window, operand 0, single buffered']
    #allocation4 [shape = 's32[1]{0}', space=sflag, size = 0x4, scoped, tag = 'scoped memory for freight_cost_predictor.1']
    %16 = vsyncpa [#allocation4], 0
    // Predicated region
    $region2: #{freight_cost_predictor.1} parent=1 // pred_check
      _
    $region3: #{freight_cost_predictor.1} parent=1 // pred_check_branch
      %18 = sbr.rel (0) target = $region5
    $region4: #{freight_cost_predictor.1} parent=1 // pred_region
      _
    $region5: #{freight_cost_predictor.1} parent=1 // pred_fallthru
      _
    // Predicated region
    $region6: #{freight_cost_predictor.1} parent=1 // pred_check
      _
    $region7: #{freight_cost_predictor.1} parent=1 // pred_check_branch
      %20 = sbr.rel (0) target = $region9
    $region8: #{freight_cost_predictor.1} parent=1 // pred_region
      _
    $region9: #{freight_cost_predictor.1} parent=1 // pred_fallthru
      _
    // Predicated region
    $region10: #{freight_cost_predictor.1} parent=1 // pred_check
      _
    $region11: #{freight_cost_predictor.1} parent=1 // pred_check_branch
      %22 = sbr.rel (0) target = $region13
    $region12: #{freight_cost_predictor.1} parent=1 // pred_region
      _
    $region13: #{freight_cost_predictor.1} parent=1 // pred_fallthru
      _
    // Predicated region
    $region14: #{freight_cost_predictor.1} parent=1 // pred_check
      _
    $region15: #{freight_cost_predictor.1} parent=1 // pred_check_branch
      %24 = sbr.rel (0) target = $region17
    $region16: #{freight_cost_predictor.1} parent=1 // pred_region
      _
    $region17: #{freight_cost_predictor.1} parent=1 // pred_fallthru
      _
    // Predicated region
    $region18: #{freight_cost_predictor.1} parent=1 // pred_check
      _
    $region19: #{freight_cost_predictor.1} parent=1 // pred_check_branch
      %26 = sbr.rel (0) target = $region21
    $region20: #{freight_cost_predictor.1} parent=1 // pred_region
      _
    $region21: #{freight_cost_predictor.1} parent=1 // pred_fallthru
      _
    // Predicated region
    $region22: #{freight_cost_predictor.1} parent=1 // pred_check
      _
    $region23: #{freight_cost_predictor.1} parent=1 // pred_check_branch
      %28 = sbr.rel (0) target = $region25
    $region24: #{freight_cost_predictor.1} parent=1 // pred_region
      _
    $region25: #{freight_cost_predictor.1} parent=1 // pred_fallthru
      _
    // Predicated region
    $region26: #{freight_cost_predictor.1} parent=1 // pred_check
      _
    $region27: #{freight_cost_predictor.1} parent=1 // pred_check_branch
      %30 = sbr.rel (0) target = $region29
    $region28: #{freight_cost_predictor.1} parent=1 // pred_region
      _
    $region29: #{freight_cost_predictor.1} parent=1 // pred_fallthru
      _
    // Predicated region
    $region30: #{freight_cost_predictor.1} parent=1 // pred_check
      _
    $region31: #{freight_cost_predictor.1} parent=1 // pred_check_branch
      %32 = sbr.rel (0) target = $region33
    $region32: #{freight_cost_predictor.1} parent=1 // pred_region
      _
    $region33: #{freight_cost_predictor.1} parent=1 // pred_fallthru
      _
    // Predicated region
    $region34: #{freight_cost_predictor.1} parent=1 // pred_check
      _
    $region35: #{freight_cost_predictor.1} parent=1 // pred_check_branch
      %34 = sbr.rel (0) target = $region37
    $region36: #{freight_cost_predictor.1} parent=1 // pred_region
      _
    $region37: #{freight_cost_predictor.1} parent=1 // pred_fallthru
      _
    %v36 = vld [vmem:[%s0] sm:$0xff]
    %v37 = vld [vmem:[%s0 + $0x8] sm:$0xff]
    %v38 = vld [vmem:[%s0 + $0x10] sm:$0xff]
    %v39 = vld [vmem:[%s0 + $0x18] sm:$0xff]
    %v40 = vld [vmem:[%s0 + $0x20] sm:$0xff]
    %v41 = vld [vmem:[%s0 + $0x28] sm:$0xff]
    %v42 = vld [vmem:[%s0 + $0x30] sm:$0xff]
    %v43 = vld [vmem:[%s0 + $0x38] sm:$0xff]
    %v44 = vld [vmem:[%s0 + $0x40] sm:$0xff]
    %v45 = vld [vmem:[%s0 + $0x48] sm:$0xff]
    %v46 = vld [vmem:[%s0 + $0x50] sm:$0xff]
    %v47 = vld [vmem:[%s0 + $0x58] sm:$0xff]
    %v48 = vld [vmem:[%s0 + $0x60] sm:$0xff]
    %v49 = vld [vmem:[%s0 + $0x68] sm:$0xff]
    %v50 = vld [vmem:[%s0 + $0x70] sm:$0xff]
    %v51 = vld [vmem:[%s0 + $0x78] sm:$0xff]
    %v52 = vld [vmem:[%s0 + $0x80] sm:$0xff]
    %v53 = vld [vmem:[%s0 + $0x88] sm:$0xff]
    %v54 = vld [vmem:[%s0 + $0x90] sm:$0xff]
    %v55 = vld [vmem:[%s0 + $0x98] sm:$0xff]
    %v56 = vld [vmem:[%s0 + $0xa0] sm:$0xff]
    %v57 = vld [vmem:[%s0 + $0xa8] sm:$0xff]
    %v58 = vld [vmem:[%s0 + $0xb0] sm:$0xff]
    %v59 = vld [vmem:[%s0 + $0xb8] sm:$0xff]
    %v60 = vld [vmem:[%s0 + $0xc0] sm:$0xff]
    %v61 = vld [vmem:[%s0 + $0xc8] sm:$0xff]
    %v62 = vld [vmem:[%s0 + $0xd0] sm:$0xff]
    %v63 = vld [vmem:[%s0 + $0xd8] sm:$0xff]
    %v64 = vld [vmem:[%s0 + $0xe0] sm:$0xff]
    %v65 = vld [vmem:[%s0 + $0xe8] sm:$0xff]
    %v66 = vld [vmem:[%s0 + $0xf0] sm:$0xff]
    %v67 = vld [vmem:[%s0 + $0xf8] sm:$0xff]
    %v68 = vld [vmem:[%s0 + $0x100] sm:$0xff]
    %v69 = vld [vmem:[%s0 + $0x108] sm:$0xff]
    %v70 = vld [vmem:[%s0 + $0x110] sm:$0xff]
    %v71 = vld [vmem:[%s0 + $0x118] sm:$0xff]
    %v72 = vld [vmem:[%s0 + $0x120] sm:$0xff]
    %v73 = vld [vmem:[%s0 + $0x128] sm:$0xff]
    %v74 = vld [vmem:[%s0 + $0x130] sm:$0xff]
    %v75 = vld [vmem:[%s0 + $0x138] sm:$0xff]
    %v76 = vld [vmem:[%s0 + $0x140] sm:$0xff]
    %v77 = vld [vmem:[%s0 + $0x148] sm:$0xff]
    %v78 = vld [vmem:[%s0 + $0x150] sm:$0xff]
    %v79 = vld [vmem:[%s0 + $0x158] sm:$0xff]
    %v80 = vld [vmem:[%s0 + $0x160] sm:$0xff]
    %v81 = vld [vmem:[%s0 + $0x168] sm:$0xff]
    %v82 = vld [vmem:[%s0 + $0x170] sm:$0xff]
    %v83 = vld [vmem:[%s0 + $0x178] sm:$0xff]
    %v84 = vld [vmem:[%s0 + $0x180] sm:$0xff]
    %v85 = vld [vmem:[%s0 + $0x188] sm:$0xff]
    %v86 = vld [vmem:[%s0 + $0x190] sm:$0xff]
    %v87 = vld [vmem:[%s0 + $0x198] sm:$0xff]
    %v88 = vld [vmem:[%s0 + $0x1a0] sm:$0xff]
    %v89 = vld [vmem:[%s0 + $0x1a8] sm:$0xff]
    %v90 = vld [vmem:[%s0 + $0x1b0] sm:$0xff]
    %v91 = vld [vmem:[%s0 + $0x1b8] sm:$0xff]
    %v92 = vld [vmem:[%s0 + $0x1c0] sm:$0xff]
    %v93 = vld [vmem:[%s0 + $0x1c8] sm:$0xff]
    %v94 = vld [vmem:[%s0 + $0x1d0] sm:$0xff]
    %v95 = vld [vmem:[%s0 + $0x1d8] sm:$0xff]
    %v96 = vld [vmem:[%s0 + $0x1e0] sm:$0xff]
    %v97 = vld [vmem:[%s0 + $0x1e8] sm:$0xff]
    %v98 = vld [vmem:[%s0 + $0x1f0] sm:$0xff]
    %v99 = vld [vmem:[%s0 + $0x1f8] sm:$0xff]
    %v100 = vld [vmem:[%s1] sm:$0xff]
    %v101 = vld [vmem:[%s1 + $0x8] sm:$0xff]
    %v102 = vld [vmem:[%s1 + $0x10] sm:$0xff]
    %v103 = vld [vmem:[%s1 + $0x18] sm:$0xff]
    %v104 = vld [vmem:[%s1 + $0x20] sm:$0xff]
    %v105 = vld [vmem:[%s1 + $0x28] sm:$0xff]
    %v106 = vld [vmem:[%s1 + $0x30] sm:$0xff]
    %v107 = vld [vmem:[%s1 + $0x38] sm:$0xff]
    %v108 = vld [vmem:[%s1 + $0x40] sm:$0xff]
    %v109 = vld [vmem:[%s1 + $0x48] sm:$0xff]
    %v110 = vld [vmem:[%s1 + $0x50] sm:$0xff]
    %v111 = vld [vmem:[%s1 + $0x58] sm:$0xff]
    %v112 = vld [vmem:[%s1 + $0x60] sm:$0xff]
    %v113 = vld [vmem:[%s1 + $0x68] sm:$0xff]
    %v114 = vld [vmem:[%s1 + $0x70] sm:$0xff]
    %v115 = vld [vmem:[%s1 + $0x78] sm:$0xff]
    %v116 = vld [vmem:[%s2] sm:$0xff]
    %v117 = vld [vmem:[%s2 + $0x8] sm:$0xff]
    %v118 = vld [vmem:[%s2 + $0x10] sm:$0xff]
    %v119 = vld [vmem:[%s2 + $0x18] sm:$0xff]
    %v120 = vld [vmem:[%s2 + $0x20] sm:$0xff]
    %v121 = vld [vmem:[%s2 + $0x28] sm:$0xff]
    %v122 = vld [vmem:[%s2 + $0x30] sm:$0xff]
    %v123 = vld [vmem:[%s2 + $0x38] sm:$0xff]
    %v124 = vld [vmem:[%s2 + $0x40] sm:$0xff]
    %v125 = vld [vmem:[%s2 + $0x48] sm:$0xff]
    %v126 = vld [vmem:[%s2 + $0x50] sm:$0xff]
    %v127 = vld [vmem:[%s2 + $0x58] sm:$0xff]
    %v128 = vld [vmem:[%s2 + $0x60] sm:$0xff]
    %v129 = vld [vmem:[%s2 + $0x68] sm:$0xff]
    %v130 = vld [vmem:[%s2 + $0x70] sm:$0xff]
    %v131 = vld [vmem:[%s2 + $0x78] sm:$0xff]
    %133 = vset.pattern.permute.xlu0 0
    %134 = vperm.xlu0 %133, %v116
    %v135 = vpop.permute.xlu0 %134
    %138 = vset.pattern.permute.xlu0 0
    %139 = vperm.xlu0 %138, %v117
    %v140 = vpop.permute.xlu0 %139
    %143 = vset.pattern.permute.xlu0 0
    %144 = vperm.xlu0 %143, %v118
    %v145 = vpop.permute.xlu0 %144
    %148 = vset.pattern.permute.xlu0 0
    %149 = vperm.xlu0 %148, %v119
    %v150 = vpop.permute.xlu0 %149
    %153 = vset.pattern.permute.xlu0 0
    %154 = vperm.xlu0 %153, %v120
    %v155 = vpop.permute.xlu0 %154
    %158 = vset.pattern.permute.xlu0 0
    %159 = vperm.xlu0 %158, %v121
    %v160 = vpop.permute.xlu0 %159
    %163 = vset.pattern.permute.xlu0 0
    %164 = vperm.xlu0 %163, %v122
    %v165 = vpop.permute.xlu0 %164
    %168 = vset.pattern.permute.xlu0 0
    %169 = vperm.xlu0 %168, %v123
    %v170 = vpop.permute.xlu0 %169
    %173 = vset.pattern.permute.xlu0 0
    %174 = vperm.xlu0 %173, %v124
    %v175 = vpop.permute.xlu0 %174
    %178 = vset.pattern.permute.xlu0 0
    %179 = vperm.xlu0 %178, %v125
    %v180 = vpop.permute.xlu0 %179
    %183 = vset.pattern.permute.xlu0 0
    %184 = vperm.xlu0 %183, %v126
    %v185 = vpop.permute.xlu0 %184
    %188 = vset.pattern.permute.xlu0 0
    %189 = vperm.xlu0 %188, %v127
    %v190 = vpop.permute.xlu0 %189
    %193 = vset.pattern.permute.xlu0 0
    %194 = vperm.xlu0 %193, %v128
    %v195 = vpop.permute.xlu0 %194
    %198 = vset.pattern.permute.xlu0 0
    %199 = vperm.xlu0 %198, %v129
    %v200 = vpop.permute.xlu0 %199
    %203 = vset.pattern.permute.xlu0 0
    %204 = vperm.xlu0 %203, %v130
    %v205 = vpop.permute.xlu0 %204
    %208 = vset.pattern.permute.xlu0 0
    %209 = vperm.xlu0 %208, %v131
    %v210 = vpop.permute.xlu0 %209
    %vm212 = vcmask 130048
    %v214 = vsel %vm212, %v100, 0
    %v217 = vsel %vm212, %v101, 0
    %v220 = vsel %vm212, %v102, 0
    %v223 = vsel %vm212, %v103, 0
    %v226 = vsel %vm212, %v104, 0
    %v229 = vsel %vm212, %v105, 0
    %v232 = vsel %vm212, %v106, 0
    %v235 = vsel %vm212, %v107, 0
    %v238 = vsel %vm212, %v108, 0
    %v241 = vsel %vm212, %v109, 0
    %v244 = vsel %vm212, %v110, 0
    %v247 = vsel %vm212, %v111, 0
    %v250 = vsel %vm212, %v112, 0
    %v253 = vsel %vm212, %v113, 0
    %v256 = vsel %vm212, %v114, 0
    %v259 = vsel %vm212, %v115, 0
    %v262 = vsel %vm212, %v36, 0
    %v265 = vsel %vm212, %v37, 0
    %v268 = vsel %vm212, %v38, 0
    %v271 = vsel %vm212, %v39, 0
    %v274 = vsel %vm212, %v40, 0
    %v277 = vsel %vm212, %v41, 0
    %v280 = vsel %vm212, %v42, 0
    %v283 = vsel %vm212, %v43, 0
    %v286 = vsel %vm212, %v44, 0
    %v289 = vsel %vm212, %v45, 0
    %v292 = vsel %vm212, %v46, 0
    %v295 = vsel %vm212, %v47, 0
    %v298 = vsel %vm212, %v48, 0
    %v301 = vsel %vm212, %v49, 0
    %v304 = vsel %vm212, %v50, 0
    %v307 = vsel %vm212, %v51, 0
    %v310 = vsel %vm212, %v52, 0
    %v313 = vsel %vm212, %v53, 0
    %v316 = vsel %vm212, %v54, 0
    %v319 = vsel %vm212, %v55, 0
    %v322 = vsel %vm212, %v56, 0
    %v325 = vsel %vm212, %v57, 0
    %v328 = vsel %vm212, %v58, 0
    %v331 = vsel %vm212, %v59, 0
    %v334 = vsel %vm212, %v60, 0
    %v337 = vsel %vm212, %v61, 0
    %v340 = vsel %vm212, %v62, 0
    %v343 = vsel %vm212, %v63, 0
    %v346 = vsel %vm212, %v64, 0
    %v349 = vsel %vm212, %v65, 0
    %v352 = vsel %vm212, %v66, 0
    %v355 = vsel %vm212, %v67, 0
    %v358 = vsel %vm212, %v68, 0
    %v361 = vsel %vm212, %v69, 0
    %v364 = vsel %vm212, %v70, 0
    %v367 = vsel %vm212, %v71, 0
    %v370 = vsel %vm212, %v72, 0
    %v373 = vsel %vm212, %v73, 0
    %v376 = vsel %vm212, %v74, 0
    %v379 = vsel %vm212, %v75, 0
    %v382 = vsel %vm212, %v76, 0
    %v385 = vsel %vm212, %v77, 0
    %v388 = vsel %vm212, %v78, 0
    %v391 = vsel %vm212, %v79, 0
    %v394 = vsel %vm212, %v80, 0
    %v397 = vsel %vm212, %v81, 0
    %v400 = vsel %vm212, %v82, 0
    %v403 = vsel %vm212, %v83, 0
    %v406 = vsel %vm212, %v84, 0
    %v409 = vsel %vm212, %v85, 0
    %v412 = vsel %vm212, %v86, 0
    %v415 = vsel %vm212, %v87, 0
    %v418 = vsel %vm212, %v88, 0
    %v421 = vsel %vm212, %v89, 0
    %v424 = vsel %vm212, %v90, 0
    %v427 = vsel %vm212, %v91, 0
    %v430 = vsel %vm212, %v92, 0
    %v433 = vsel %vm212, %v93, 0
    %v436 = vsel %vm212, %v94, 0
    %v439 = vsel %vm212, %v95, 0
    %v442 = vsel %vm212, %v96, 0
    %v445 = vsel %vm212, %v97, 0
    %v448 = vsel %vm212, %v98, 0
    %v451 = vsel %vm212, %v99, 0
    %453 = vmatprep.subr.mxu0 0.0
    %454 = vmatpush1.xpose.msra.mxu0 %v262
    %455 = vmatprep.subr.mxu0 0.0
    %456 = vmatpush1.xpose.msra.mxu0 %v265
    %457 = vmatprep.subr.mxu0 0.0
    %458 = vmatpush1.xpose.msra.mxu0 %v268
    %459 = vmatprep.subr.mxu0 0.0
    %460 = vmatpush1.xpose.msra.mxu0 %v271
    %461 = vmatprep.subr.mxu0 0.0
    %462 = vmatpush1.xpose.msra.mxu0 %v274
    %463 = vmatprep.subr.mxu0 0.0
    %464 = vmatpush1.xpose.msra.mxu0 %v277
    %465 = vmatprep.subr.mxu0 0.0
    %466 = vmatpush1.xpose.msra.mxu0 %v280
    %467 = vmatprep.subr.mxu0 0.0
    %468 = vmatpush1.xpose.msra.mxu0 %v283
    %469 = vmatprep.subr.mxu0 0.0
    %470 = vmatpush1.xpose.msra.mxu0 %v286
    %471 = vmatprep.subr.mxu0 0.0
    %472 = vmatpush1.xpose.msra.mxu0 %v289
    %473 = vmatprep.subr.mxu0 0.0
    %474 = vmatpush1.xpose.msra.mxu0 %v292
    %475 = vmatprep.subr.mxu0 0.0
    %476 = vmatpush1.xpose.msra.mxu0 %v295
    %477 = vmatprep.subr.mxu0 0.0
    %478 = vmatpush1.xpose.msra.mxu0 %v298
    %479 = vmatprep.subr.mxu0 0.0
    %480 = vmatpush1.xpose.msra.mxu0 %v301
    %481 = vmatprep.subr.mxu0 0.0
    %482 = vmatpush1.xpose.msra.mxu0 %v304
    %483 = vmatprep.subr.mxu0 0.0
    %484 = vmatpush1.xpose.msra.mxu0 %v307
    %485 = vmatprep.subr.mxu0 0.0
    %486 = vmatpush1.xpose.msra.mxu0 %v310
    %487 = vmatprep.subr.mxu0 0.0
    %488 = vmatpush1.xpose.msra.mxu0 %v313
    %489 = vmatprep.subr.mxu0 0.0
    %490 = vmatpush1.xpose.msra.mxu0 %v316
    %491 = vmatprep.subr.mxu0 0.0
    %492 = vmatpush1.xpose.msra.mxu0 %v319
    %493 = vmatprep.subr.mxu0 0.0
    %494 = vmatpush1.xpose.msra.mxu0 %v322
    %495 = vmatprep.subr.mxu0 0.0
    %496 = vmatpush1.xpose.msra.mxu0 %v325
    %497 = vmatprep.subr.mxu0 0.0
    %498 = vmatpush1.xpose.msra.mxu0 %v328
    %499 = vmatprep.subr.mxu0 0.0
    %500 = vmatpush1.xpose.msra.mxu0 %v331
    %501 = vmatprep.subr.mxu0 0.0
    %502 = vmatpush1.xpose.msra.mxu0 %v334
    %503 = vmatprep.subr.mxu0 0.0
    %504 = vmatpush1.xpose.msra.mxu0 %v337
    %505 = vmatprep.subr.mxu0 0.0
    %506 = vmatpush1.xpose.msra.mxu0 %v340
    %507 = vmatprep.subr.mxu0 0.0
    %508 = vmatpush1.xpose.msra.mxu0 %v343
    %509 = vmatprep.subr.mxu0 0.0
    %510 = vmatpush1.xpose.msra.mxu0 %v346
    %511 = vmatprep.subr.mxu0 0.0
    %512 = vmatpush1.xpose.msra.mxu0 %v349
    %513 = vmatprep.subr.mxu0 0.0
    %514 = vmatpush1.xpose.msra.mxu0 %v352
    %515 = vmatprep.subr.mxu0 0.0
    %516 = vmatpush1.xpose.msra.mxu0 %v355
    %517 = vmatprep.mubr.f32.mxu0 0.0
    %518 = vmatmul.mubr.f32.gmra.mrb[0].mxu0 %v214
    %v519 = vpop.f32.mrb[0].mxu0
    %v520 = vadd.f32 %v135, %v519
    %v521 = vpop.f32.mrb[0].mxu0
    %v522 = vadd.f32 %v135, %v521
    %523 = vmatprep.mubr.f32.mxu0 0.0
    %524 = vmatmul.mubr.f32.gmra.mrb[0].mxu0 %v217
    %v525 = vpop.f32.mrb[0].mxu0
    %v526 = vadd.f32 %v140, %v525
    %v527 = vpop.f32.mrb[0].mxu0
    %v528 = vadd.f32 %v140, %v527
    %529 = vmatprep.mubr.f32.mxu0 0.0
    %530 = vmatmul.mubr.f32.gmra.mrb[0].mxu0 %v220
    %v531 = vpop.f32.mrb[0].mxu0
    %v532 = vadd.f32 %v145, %v531
    %v533 = vpop.f32.mrb[0].mxu0
    %v534 = vadd.f32 %v145, %v533
    %535 = vmatprep.mubr.f32.mxu0 0.0
    %536 = vmatmul.mubr.f32.gmra.mrb[0].mxu0 %v223
    %v537 = vpop.f32.mrb[0].mxu0
    %v538 = vadd.f32 %v150, %v537
    %v539 = vpop.f32.mrb[0].mxu0
    %v540 = vadd.f32 %v150, %v539
    %541 = vmatprep.mubr.f32.mxu0 0.0
    %542 = vmatmul.mubr.f32.gmra.mrb[0].mxu0 %v226
    %v543 = vpop.f32.mrb[0].mxu0
    %v544 = vadd.f32 %v155, %v543
    %v545 = vpop.f32.mrb[0].mxu0
    %v546 = vadd.f32 %v155, %v545
    %547 = vmatprep.mubr.f32.mxu0 0.0
    %548 = vmatmul.mubr.f32.gmra.mrb[0].mxu0 %v229
    %v549 = vpop.f32.mrb[0].mxu0
    %v550 = vadd.f32 %v160, %v549
    %v551 = vpop.f32.mrb[0].mxu0
    %v552 = vadd.f32 %v160, %v551
    %553 = vmatprep.mubr.f32.mxu0 0.0
    %554 = vmatmul.mubr.f32.gmra.mrb[0].mxu0 %v232
    %v555 = vpop.f32.mrb[0].mxu0
    %v556 = vadd.f32 %v165, %v555
    %v557 = vpop.f32.mrb[0].mxu0
    %v558 = vadd.f32 %v165, %v557
    %559 = vmatprep.mubr.f32.mxu0 0.0
    %560 = vmatmul.mubr.f32.gmra.mrb[0].mxu0 %v235
    %v561 = vpop.f32.mrb[0].mxu0
    %v562 = vadd.f32 %v170, %v561
    %v563 = vpop.f32.mrb[0].mxu0
    %v564 = vadd.f32 %v170, %v563
    %565 = vmatprep.mubr.f32.mxu0 0.0
    %566 = vmatmul.mubr.f32.gmra.mrb[0].mxu0 %v238
    %v567 = vpop.f32.mrb[0].mxu0
    %v568 = vadd.f32 %v175, %v567
    %v569 = vpop.f32.mrb[0].mxu0
    %v570 = vadd.f32 %v175, %v569
    %571 = vmatprep.mubr.f32.mxu0 0.0
    %572 = vmatmul.mubr.f32.gmra.mrb[0].mxu0 %v241
    %v573 = vpop.f32.mrb[0].mxu0
    %v574 = vadd.f32 %v180, %v573
    %v575 = vpop.f32.mrb[0].mxu0
    %v576 = vadd.f32 %v180, %v575
    %577 = vmatprep.mubr.f32.mxu0 0.0
    %578 = vmatmul.mubr.f32.gmra.mrb[0].mxu0 %v244
    %v579 = vpop.f32.mrb[0].mxu0
    %v580 = vadd.f32 %v185, %v579
    %v581 = vpop.f32.mrb[0].mxu0
    %v582 = vadd.f32 %v185, %v581
    %583 = vmatprep.mubr.f32.mxu0 0.0
    %584 = vmatmul.mubr.f32.gmra.mrb[0].mxu0 %v247
    %v585 = vpop.f32.mrb[0].mxu0
    %v586 = vadd.f32 %v190, %v585
    %v587 = vpop.f32.mrb[0].mxu0
    %v588 = vadd.f32 %v190, %v587
    %589 = vmatprep.mubr.f32.mxu0 0.0
    %590 = vmatmul.mubr.f32.gmra.mrb[0].mxu0 %v250
    %v591 = vpop.f32.mrb[0].mxu0
    %v592 = vadd.f32 %v195, %v591
    %v593 = vpop.f32.mrb[0].mxu0
    %v594 = vadd.f32 %v195, %v593
    %595 = vmatprep.mubr.f32.mxu0 0.0
    %596 = vmatmul.mubr.f32.gmra.mrb[0].mxu0 %v253
    %v597 = vpop.f32.mrb[0].mxu0
    %v598 = vadd.f32 %v200, %v597
    %v599 = vpop.f32.mrb[0].mxu0
    %v600 = vadd.f32 %v200, %v599
    %601 = vmatprep.mubr.f32.mxu0 0.0
    %602 = vmatmul.mubr.f32.gmra.mrb[0].mxu0 %v256
    %v603 = vpop.f32.mrb[0].mxu0
    %v604 = vadd.f32 %v205, %v603
    %v605 = vpop.f32.mrb[0].mxu0
    %v606 = vadd.f32 %v205, %v605
    %607 = vmatprep.mubr.f32.mxu0 0.0
    %608 = vmatmul.mubr.f32.gmra.mrb[0].mxu0 %v259
    %v609 = vpop.f32.mrb[0].mxu0
    %v610 = vadd.f32 %v210, %v609
    %v611 = vpop.f32.mrb[0].mxu0
    %v612 = vadd.f32 %v210, %v611
    %613 = vdwg.mxu0
    %614 = vmatprep.subr.mxu0 0.0
    %615 = vmatpush1.xpose.msra.mxu0 %v358
    %616 = vmatprep.subr.mxu0 0.0
    %617 = vmatpush1.xpose.msra.mxu0 %v361
    %618 = vmatprep.subr.mxu0 0.0
    %619 = vmatpush1.xpose.msra.mxu0 %v364
    %620 = vmatprep.subr.mxu0 0.0
    %621 = vmatpush1.xpose.msra.mxu0 %v367
    %622 = vmatprep.subr.mxu0 0.0
    %623 = vmatpush1.xpose.msra.mxu0 %v370
    %624 = vmatprep.subr.mxu0 0.0
    %625 = vmatpush1.xpose.msra.mxu0 %v373
    %626 = vmatprep.subr.mxu0 0.0
    %627 = vmatpush1.xpose.msra.mxu0 %v376
    %628 = vmatprep.subr.mxu0 0.0
    %629 = vmatpush1.xpose.msra.mxu0 %v379
    %630 = vmatprep.subr.mxu0 0.0
    %631 = vmatpush1.xpose.msra.mxu0 %v382
    %632 = vmatprep.subr.mxu0 0.0
    %633 = vmatpush1.xpose.msra.mxu0 %v385
    %634 = vmatprep.subr.mxu0 0.0
    %635 = vmatpush1.xpose.msra.mxu0 %v388
    %636 = vmatprep.subr.mxu0 0.0
    %637 = vmatpush1.xpose.msra.mxu0 %v391
    %638 = vmatprep.subr.mxu0 0.0
    %639 = vmatpush1.xpose.msra.mxu0 %v394
    %640 = vmatprep.subr.mxu0 0.0
    %641 = vmatpush1.xpose.msra.mxu0 %v397
    %642 = vmatprep.subr.mxu0 0.0
    %643 = vmatpush1.xpose.msra.mxu0 %v400
    %644 = vmatprep.subr.mxu0 0.0
    %645 = vmatpush1.xpose.msra.mxu0 %v403
    %646 = vmatprep.subr.mxu0 0.0
    %647 = vmatpush1.xpose.msra.mxu0 %v406
    %648 = vmatprep.subr.mxu0 0.0
    %649 = vmatpush1.xpose.msra.mxu0 %v409
    %650 = vmatprep.subr.mxu0 0.0
    %651 = vmatpush1.xpose.msra.mxu0 %v412
    %652 = vmatprep.subr.mxu0 0.0
    %653 = vmatpush1.xpose.msra.mxu0 %v415
    %654 = vmatprep.subr.mxu0 0.0
    %655 = vmatpush1.xpose.msra.mxu0 %v418
    %656 = vmatprep.subr.mxu0 0.0
    %657 = vmatpush1.xpose.msra.mxu0 %v421
    %658 = vmatprep.subr.mxu0 0.0
    %659 = vmatpush1.xpose.msra.mxu0 %v424
    %660 = vmatprep.subr.mxu0 0.0
    %661 = vmatpush1.xpose.msra.mxu0 %v427
    %662 = vmatprep.subr.mxu0 0.0
    %663 = vmatpush1.xpose.msra.mxu0 %v430
    %664 = vmatprep.subr.mxu0 0.0
    %665 = vmatpush1.xpose.msra.mxu0 %v433
    %666 = vmatprep.subr.mxu0 0.0
    %667 = vmatpush1.xpose.msra.mxu0 %v436
    %668 = vmatprep.subr.mxu0 0.0
    %669 = vmatpush1.xpose.msra.mxu0 %v439
    %670 = vmatprep.subr.mxu0 0.0
    %671 = vmatpush1.xpose.msra.mxu0 %v442
    %672 = vmatprep.subr.mxu0 0.0
    %673 = vmatpush1.xpose.msra.mxu0 %v445
    %674 = vmatprep.subr.mxu0 0.0
    %675 = vmatpush1.xpose.msra.mxu0 %v448
    %676 = vmatprep.subr.mxu0 0.0
    %677 = vmatpush1.xpose.msra.mxu0 %v451
    %678 = vmatprep.mubr.f32.mxu0 0.0
    %679 = vmatmul.mubr.f32.gmra.mrb[0].mxu0 %v214
    %v680 = vpop.f32.mrb[0].mxu0
    %v681 = vadd.f32 %v135, %v680
    %v682 = vpop.f32.mrb[0].mxu0
    %v683 = vadd.f32 %v135, %v682
    %684 = vmatprep.mubr.f32.mxu0 0.0
    %685 = vmatmul.mubr.f32.gmra.mrb[0].mxu0 %v217
    %v686 = vpop.f32.mrb[0].mxu0
    %v687 = vadd.f32 %v140, %v686
    %v688 = vpop.f32.mrb[0].mxu0
    %v689 = vadd.f32 %v140, %v688
    %690 = vmatprep.mubr.f32.mxu0 0.0
    %691 = vmatmul.mubr.f32.gmra.mrb[0].mxu0 %v220
    %v692 = vpop.f32.mrb[0].mxu0
    %v693 = vadd.f32 %v145, %v692
    %v694 = vpop.f32.mrb[0].mxu0
    %v695 = vadd.f32 %v145, %v694
    %696 = vmatprep.mubr.f32.mxu0 0.0
    %697 = vmatmul.mubr.f32.gmra.mrb[0].mxu0 %v223
    %v698 = vpop.f32.mrb[0].mxu0
    %v699 = vadd.f32 %v150, %v698
    %v700 = vpop.f32.mrb[0].mxu0
    %v701 = vadd.f32 %v150, %v700
    %702 = vmatprep.mubr.f32.mxu0 0.0
    %703 = vmatmul.mubr.f32.gmra.mrb[0].mxu0 %v226
    %v704 = vpop.f32.mrb[0].mxu0
    %v705 = vadd.f32 %v155, %v704
    %v706 = vpop.f32.mrb[0].mxu0
    %v707 = vadd.f32 %v155, %v706
    %708 = vmatprep.mubr.f32.mxu0 0.0
    %709 = vmatmul.mubr.f32.gmra.mrb[0].mxu0 %v229
    %v710 = vpop.f32.mrb[0].mxu0
    %v711 = vadd.f32 %v160, %v710
    %v712 = vpop.f32.mrb[0].mxu0
    %v713 = vadd.f32 %v160, %v712
    %714 = vmatprep.mubr.f32.mxu0 0.0
    %715 = vmatmul.mubr.f32.gmra.mrb[0].mxu0 %v232
    %v716 = vpop.f32.mrb[0].mxu0
    %v717 = vadd.f32 %v165, %v716
    %v718 = vpop.f32.mrb[0].mxu0
    %v719 = vadd.f32 %v165, %v718
    %720 = vmatprep.mubr.f32.mxu0 0.0
    %721 = vmatmul.mubr.f32.gmra.mrb[0].mxu0 %v235
    %v722 = vpop.f32.mrb[0].mxu0
    %v723 = vadd.f32 %v170, %v722
    %v724 = vpop.f32.mrb[0].mxu0
    %v725 = vadd.f32 %v170, %v724
    %726 = vmatprep.mubr.f32.mxu0 0.0
    %727 = vmatmul.mubr.f32.gmra.mrb[0].mxu0 %v238
    %v728 = vpop.f32.mrb[0].mxu0
    %v729 = vadd.f32 %v175, %v728
    %v730 = vpop.f32.mrb[0].mxu0
    %v731 = vadd.f32 %v175, %v730
    %732 = vmatprep.mubr.f32.mxu0 0.0
    %733 = vmatmul.mubr.f32.gmra.mrb[0].mxu0 %v241
    %v734 = vpop.f32.mrb[0].mxu0
    %v735 = vadd.f32 %v180, %v734
    %v736 = vpop.f32.mrb[0].mxu0
    %v737 = vadd.f32 %v180, %v736
    %738 = vmatprep.mubr.f32.mxu0 0.0
    %739 = vmatmul.mubr.f32.gmra.mrb[0].mxu0 %v244
    %v740 = vpop.f32.mrb[0].mxu0
    %v741 = vadd.f32 %v185, %v740
    %v742 = vpop.f32.mrb[0].mxu0
    %v743 = vadd.f32 %v185, %v742
    %744 = vmatprep.mubr.f32.mxu0 0.0
    %745 = vmatmul.mubr.f32.gmra.mrb[0].mxu0 %v247
    %v746 = vpop.f32.mrb[0].mxu0
    %v747 = vadd.f32 %v190, %v746
    %v748 = vpop.f32.mrb[0].mxu0
    %v749 = vadd.f32 %v190, %v748
    %750 = vmatprep.mubr.f32.mxu0 0.0
    %751 = vmatmul.mubr.f32.gmra.mrb[0].mxu0 %v250
    %v752 = vpop.f32.mrb[0].mxu0
    %v753 = vadd.f32 %v195, %v752
    %v754 = vpop.f32.mrb[0].mxu0
    %v755 = vadd.f32 %v195, %v754
    %756 = vmatprep.mubr.f32.mxu0 0.0
    %757 = vmatmul.mubr.f32.gmra.mrb[0].mxu0 %v253
    %v758 = vpop.f32.mrb[0].mxu0
    %v759 = vadd.f32 %v200, %v758
    %v760 = vpop.f32.mrb[0].mxu0
    %v761 = vadd.f32 %v200, %v760
    %762 = vmatprep.mubr.f32.mxu0 0.0
    %763 = vmatmul.mubr.f32.gmra.mrb[0].mxu0 %v256
    %v764 = vpop.f32.mrb[0].mxu0
    %v765 = vadd.f32 %v205, %v764
    %v766 = vpop.f32.mrb[0].mxu0
    %v767 = vadd.f32 %v205, %v766
    %768 = vmatprep.mubr.f32.mxu0 0.0
    %769 = vmatmul.mubr.f32.gmra.mrb[0].mxu0 %v259
    %v770 = vpop.f32.mrb[0].mxu0
    %v771 = vadd.f32 %v210, %v770
    %v772 = vpop.f32.mrb[0].mxu0
    %v773 = vadd.f32 %v210, %v772
    %774 = vdwg.mxu0
    %v775 = vmax.f32 %v520, 0.0
    %v776 = vmax.f32 %v522, 0.0
    %v777 = vmax.f32 %v681, 0.0
    %v778 = vmax.f32 %v683, 0.0
    %v779 = vmax.f32 %v526, 0.0
    %v780 = vmax.f32 %v528, 0.0
    %v781 = vmax.f32 %v687, 0.0
    %v782 = vmax.f32 %v689, 0.0
    %v783 = vmax.f32 %v532, 0.0
    %v784 = vmax.f32 %v534, 0.0
    %v785 = vmax.f32 %v693, 0.0
    %v786 = vmax.f32 %v695, 0.0
    %v787 = vmax.f32 %v538, 0.0
    %v788 = vmax.f32 %v540, 0.0
    %v789 = vmax.f32 %v699, 0.0
    %v790 = vmax.f32 %v701, 0.0
    %v791 = vmax.f32 %v544, 0.0
    %v792 = vmax.f32 %v546, 0.0
    %v793 = vmax.f32 %v705, 0.0
    %v794 = vmax.f32 %v707, 0.0
    %v795 = vmax.f32 %v550, 0.0
    %v796 = vmax.f32 %v552, 0.0
    %v797 = vmax.f32 %v711, 0.0
    %v798 = vmax.f32 %v713, 0.0
    %v799 = vmax.f32 %v556, 0.0
    %v800 = vmax.f32 %v558, 0.0
    %v801 = vmax.f32 %v717, 0.0
    %v802 = vmax.f32 %v719, 0.0
    %v803 = vmax.f32 %v562, 0.0
    %v804 = vmax.f32 %v564, 0.0
    %v805 = vmax.f32 %v723, 0.0
    %v806 = vmax.f32 %v725, 0.0
    %v807 = vmax.f32 %v568, 0.0
    %v808 = vmax.f32 %v570, 0.0
    %v809 = vmax.f32 %v729, 0.0
    %v810 = vmax.f32 %v731, 0.0
    %v811 = vmax.f32 %v574, 0.0
    %v812 = vmax.f32 %v576, 0.0
    %v813 = vmax.f32 %v735, 0.0
    %v814 = vmax.f32 %v737, 0.0
    %v815 = vmax.f32 %v580, 0.0
    %v816 = vmax.f32 %v582, 0.0
    %v817 = vmax.f32 %v741, 0.0
    %v818 = vmax.f32 %v743, 0.0
    %v819 = vmax.f32 %v586, 0.0
    %v820 = vmax.f32 %v588, 0.0
    %v821 = vmax.f32 %v747, 0.0
    %v822 = vmax.f32 %v749, 0.0
    %v823 = vmax.f32 %v592, 0.0
    %v824 = vmax.f32 %v594, 0.0
    %v825 = vmax.f32 %v753, 0.0
    %v826 = vmax.f32 %v755, 0.0
    %v827 = vmax.f32 %v598, 0.0
    %v828 = vmax.f32 %v600, 0.0
    %v829 = vmax.f32 %v759, 0.0
    %v830 = vmax.f32 %v761, 0.0
    %v831 = vmax.f32 %v604, 0.0
    %v832 = vmax.f32 %v606, 0.0
    %v833 = vmax.f32 %v765, 0.0
    %v834 = vmax.f32 %v767, 0.0
    %v835 = vmax.f32 %v610, 0.0
    %v836 = vmax.f32 %v612, 0.0
    %v837 = vmax.f32 %v771, 0.0
    %v838 = vmax.f32 %v773, 0.0
    %v839 = vld [vmem:[%s3] sm:$0xf]
    %v840 = vld [vmem:[%s3 + $0x4] sm:$0xf]
    %v841 = vld [vmem:[%s3 + $0x8] sm:$0xf]
    %v842 = vld [vmem:[%s3 + $0xc] sm:$0xf]
    %v843 = vld [vmem:[%s3 + $0x10] sm:$0xf]
    %v844 = vld [vmem:[%s3 + $0x14] sm:$0xf]
    %v845 = vld [vmem:[%s3 + $0x18] sm:$0xf]
    %v846 = vld [vmem:[%s3 + $0x1c] sm:$0xf]
    %v847 = vpack.c.bf16 %v779, %v775
    %v848 = vpack.c.bf16 %v780, %v776
    %v849 = vpack.c.bf16 %v781, %v777
    %v850 = vpack.c.bf16 %v782, %v778
    %v851 = vpack.c.bf16 %v787, %v783
    %v852 = vpack.c.bf16 %v788, %v784
    %v853 = vpack.c.bf16 %v789, %v785
    %v854 = vpack.c.bf16 %v790, %v786
    %v855 = vpack.c.bf16 %v795, %v791
    %v856 = vpack.c.bf16 %v796, %v792
    %v857 = vpack.c.bf16 %v797, %v793
    %v858 = vpack.c.bf16 %v798, %v794
    %v859 = vpack.c.bf16 %v803, %v799
    %v860 = vpack.c.bf16 %v804, %v800
    %v861 = vpack.c.bf16 %v805, %v801
    %v862 = vpack.c.bf16 %v806, %v802
    %v863 = vpack.c.bf16 %v811, %v807
    %v864 = vpack.c.bf16 %v812, %v808
    %v865 = vpack.c.bf16 %v813, %v809
    %v866 = vpack.c.bf16 %v814, %v810
    %v867 = vpack.c.bf16 %v819, %v815
    %v868 = vpack.c.bf16 %v820, %v816
    %v869 = vpack.c.bf16 %v821, %v817
    %v870 = vpack.c.bf16 %v822, %v818
    %v871 = vpack.c.bf16 %v827, %v823
    %v872 = vpack.c.bf16 %v828, %v824
    %v873 = vpack.c.bf16 %v829, %v825
    %v874 = vpack.c.bf16 %v830, %v826
    %v875 = vpack.c.bf16 %v835, %v831
    %v876 = vpack.c.bf16 %v836, %v832
    %v877 = vpack.c.bf16 %v837, %v833
    %v878 = vpack.c.bf16 %v838, %v834
    %v879 = vld [vmem:[%s4] sm:$0xff]
    %v880 = vld [vmem:[%s4 + $0x8] sm:$0xff]
    %v881 = vld [vmem:[%s4 + $0x10] sm:$0xff]
    %v882 = vld [vmem:[%s4 + $0x18] sm:$0xff]
    %v883 = vld [vmem:[%s4 + $0x20] sm:$0xff]
    %v884 = vld [vmem:[%s4 + $0x28] sm:$0xff]
    %v885 = vld [vmem:[%s4 + $0x30] sm:$0xff]
    %v886 = vld [vmem:[%s4 + $0x38] sm:$0xff]
    %888 = vset.pattern.permute.xlu0 0
    %889 = vperm.xlu0 %888, %v879
    %v890 = vpop.permute.xlu0 %889
    %893 = vset.pattern.permute.xlu0 0
    %894 = vperm.xlu0 %893, %v880
    %v895 = vpop.permute.xlu0 %894
    %898 = vset.pattern.permute.xlu0 0
    %899 = vperm.xlu0 %898, %v881
    %v900 = vpop.permute.xlu0 %899
    %903 = vset.pattern.permute.xlu0 0
    %904 = vperm.xlu0 %903, %v882
    %v905 = vpop.permute.xlu0 %904
    %908 = vset.pattern.permute.xlu0 0
    %909 = vperm.xlu0 %908, %v883
    %v910 = vpop.permute.xlu0 %909
    %913 = vset.pattern.permute.xlu0 0
    %914 = vperm.xlu0 %913, %v884
    %v915 = vpop.permute.xlu0 %914
    %918 = vset.pattern.permute.xlu0 0
    %919 = vperm.xlu0 %918, %v885
    %v920 = vpop.permute.xlu0 %919
    %923 = vset.pattern.permute.xlu0 0
    %924 = vperm.xlu0 %923, %v886
    %v925 = vpop.permute.xlu0 %924
    %v935 = vunpack.c.l.b16 %v839
    %v936 = vunpack.c.l.b16 %v840
    %v937 = vunpack.c.l.b16 %v841
    %v938 = vunpack.c.l.b16 %v842
    %v939 = vunpack.c.l.b16 %v843
    %v940 = vunpack.c.l.b16 %v844
    %v941 = vunpack.c.l.b16 %v845
    %v942 = vunpack.c.l.b16 %v846
    %v943 = vpack.c.b16 %v936, %v935
    %v944 = vpack.c.b16 %v938, %v937
    %v945 = vpack.c.b16 %v940, %v939
    %v946 = vpack.c.b16 %v942, %v941
    %951 = vmatprep.subr.bf16.mxu0 %v848
    %952 = vmatpush1.bf16.msra.mxu0 %v847
    %953 = vmatprep.subr.bf16.mxu0 %v852
    %954 = vmatpush1.bf16.msra.mxu0 %v851
    %955 = vmatprep.subr.bf16.mxu0 %v856
    %956 = vmatpush1.bf16.msra.mxu0 %v855
    %957 = vmatprep.subr.bf16.mxu0 %v860
    %958 = vmatpush1.bf16.msra.mxu0 %v859
    %959 = vmatprep.subr.bf16.mxu0 %v864
    %960 = vmatpush1.bf16.msra.mxu0 %v863
    %961 = vmatprep.subr.bf16.mxu0 %v868
    %962 = vmatpush1.bf16.msra.mxu0 %v867
    %963 = vmatprep.subr.bf16.mxu0 %v872
    %964 = vmatpush1.bf16.msra.mxu0 %v871
    %965 = vmatprep.subr.bf16.mxu0 %v876
    %966 = vmatpush1.bf16.msra.mxu0 %v875
    %967 = vmatprep.subr.bf16.mxu0 0
    %968 = vmatpush1.bf16.msra.mxu0 0
    %969 = vmatprep.subr.bf16.mxu0 0
    %970 = vmatpush1.bf16.msra.mxu0 0
    %971 = vmatprep.subr.bf16.mxu0 0
    %972 = vmatpush1.bf16.msra.mxu0 0
    %973 = vmatprep.subr.bf16.mxu0 0
    %974 = vmatpush1.bf16.msra.mxu0 0
    %975 = vmatprep.subr.bf16.mxu0 0
    %976 = vmatpush1.bf16.msra.mxu0 0
    %977 = vmatprep.subr.bf16.mxu0 0
    %978 = vmatpush1.bf16.msra.mxu0 0
    %979 = vmatprep.subr.bf16.mxu0 0
    %980 = vmatpush1.bf16.msra.mxu0 0
    %981 = vmatprep.subr.bf16.mxu0 0
    %982 = vmatpush1.bf16.msra.mxu0 0
    %983 = vmatprep.mubr.bf16.mxu0 0
    %984 = vmatmul.mubr.bf16.gmra.mrb[0].mxu0 %v943
    %v985 = vpop.f32.mrb[0].mxu0
    %v986 = vadd.f32 %v890, %v985
    %v987 = vpop.f32.mrb[0].mxu0
    %v988 = vadd.f32 %v890, %v987
    %v989 = vpop.f32.mrb[0].mxu0
    %v990 = vadd.f32 %v895, %v989
    %v991 = vpop.f32.mrb[0].mxu0
    %v992 = vadd.f32 %v895, %v991
    %993 = vmatprep.mubr.bf16.mxu0 0
    %994 = vmatmul.mubr.bf16.gmra.mrb[0].mxu0 %v944
    %v995 = vpop.f32.mrb[0].mxu0
    %v996 = vadd.f32 %v900, %v995
    %v997 = vpop.f32.mrb[0].mxu0
    %v998 = vadd.f32 %v900, %v997
    %v999 = vpop.f32.mrb[0].mxu0
    %v1000 = vadd.f32 %v905, %v999
    %v1001 = vpop.f32.mrb[0].mxu0
    %v1002 = vadd.f32 %v905, %v1001
    %1003 = vmatprep.mubr.bf16.mxu0 0
    %1004 = vmatmul.mubr.bf16.gmra.mrb[0].mxu0 %v945
    %v1005 = vpop.f32.mrb[0].mxu0
    %v1006 = vadd.f32 %v910, %v1005
    %v1007 = vpop.f32.mrb[0].mxu0
    %v1008 = vadd.f32 %v910, %v1007
    %v1009 = vpop.f32.mrb[0].mxu0
    %v1010 = vadd.f32 %v915, %v1009
    %v1011 = vpop.f32.mrb[0].mxu0
    %v1012 = vadd.f32 %v915, %v1011
    %1013 = vmatprep.mubr.bf16.mxu0 0
    %1014 = vmatmul.mubr.bf16.gmra.mrb[0].mxu0 %v946
    %v1015 = vpop.f32.mrb[0].mxu0
    %v1016 = vadd.f32 %v920, %v1015
    %v1017 = vpop.f32.mrb[0].mxu0
    %v1018 = vadd.f32 %v920, %v1017
    %v1019 = vpop.f32.mrb[0].mxu0
    %v1020 = vadd.f32 %v925, %v1019
    %v1021 = vpop.f32.mrb[0].mxu0
    %v1022 = vadd.f32 %v925, %v1021
    %1023 = vdwg.mxu0
    %1024 = vmatprep.subr.bf16.mxu0 %v850
    %1025 = vmatpush1.bf16.msra.mxu0 %v849
    %1026 = vmatprep.subr.bf16.mxu0 %v854
    %1027 = vmatpush1.bf16.msra.mxu0 %v853
    %1028 = vmatprep.subr.bf16.mxu0 %v858
    %1029 = vmatpush1.bf16.msra.mxu0 %v857
    %1030 = vmatprep.subr.bf16.mxu0 %v862
    %1031 = vmatpush1.bf16.msra.mxu0 %v861
    %1032 = vmatprep.subr.bf16.mxu0 %v866
    %1033 = vmatpush1.bf16.msra.mxu0 %v865
    %1034 = vmatprep.subr.bf16.mxu0 %v870
    %1035 = vmatpush1.bf16.msra.mxu0 %v869
    %1036 = vmatprep.subr.bf16.mxu0 %v874
    %1037 = vmatpush1.bf16.msra.mxu0 %v873
    %1038 = vmatprep.subr.bf16.mxu0 %v878
    %1039 = vmatpush1.bf16.msra.mxu0 %v877
    %1040 = vmatprep.subr.bf16.mxu0 0
    %1041 = vmatpush1.bf16.msra.mxu0 0
    %1042 = vmatprep.subr.bf16.mxu0 0
    %1043 = vmatpush1.bf16.msra.mxu0 0
    %1044 = vmatprep.subr.bf16.mxu0 0
    %1045 = vmatpush1.bf16.msra.mxu0 0
    %1046 = vmatprep.subr.bf16.mxu0 0
    %1047 = vmatpush1.bf16.msra.mxu0 0
    %1048 = vmatprep.subr.bf16.mxu0 0
    %1049 = vmatpush1.bf16.msra.mxu0 0
    %1050 = vmatprep.subr.bf16.mxu0 0
    %1051 = vmatpush1.bf16.msra.mxu0 0
    %1052 = vmatprep.subr.bf16.mxu0 0
    %1053 = vmatpush1.bf16.msra.mxu0 0
    %1054 = vmatprep.subr.bf16.mxu0 0
    %1055 = vmatpush1.bf16.msra.mxu0 0
    %1056 = vmatprep.mubr.bf16.mxu0 0
    %1057 = vmatmul.mubr.bf16.gmra.mrb[0].mxu0 %v943
    %v1058 = vpop.f32.mrb[0].mxu0
    %v1059 = vadd.f32 %v890, %v1058
    %v1060 = vpop.f32.mrb[0].mxu0
    %v1061 = vadd.f32 %v890, %v1060
    %v1062 = vpop.f32.mrb[0].mxu0
    %v1063 = vadd.f32 %v895, %v1062
    %v1064 = vpop.f32.mrb[0].mxu0
    %v1065 = vadd.f32 %v895, %v1064
    %1066 = vmatprep.mubr.bf16.mxu0 0
    %1067 = vmatmul.mubr.bf16.gmra.mrb[0].mxu0 %v944
    %v1068 = vpop.f32.mrb[0].mxu0
    %v1069 = vadd.f32 %v900, %v1068
    %v1070 = vpop.f32.mrb[0].mxu0
    %v1071 = vadd.f32 %v900, %v1070
    %v1072 = vpop.f32.mrb[0].mxu0
    %v1073 = vadd.f32 %v905, %v1072
    %v1074 = vpop.f32.mrb[0].mxu0
    %v1075 = vadd.f32 %v905, %v1074
    %1076 = vmatprep.mubr.bf16.mxu0 0
    %1077 = vmatmul.mubr.bf16.gmra.mrb[0].mxu0 %v945
    %v1078 = vpop.f32.mrb[0].mxu0
    %v1079 = vadd.f32 %v910, %v1078
    %v1080 = vpop.f32.mrb[0].mxu0
    %v1081 = vadd.f32 %v910, %v1080
    %v1082 = vpop.f32.mrb[0].mxu0
    %v1083 = vadd.f32 %v915, %v1082
    %v1084 = vpop.f32.mrb[0].mxu0
    %v1085 = vadd.f32 %v915, %v1084
    %1086 = vmatprep.mubr.bf16.mxu0 0
    %1087 = vmatmul.mubr.bf16.gmra.mrb[0].mxu0 %v946
    %v1088 = vpop.f32.mrb[0].mxu0
    %v1089 = vadd.f32 %v920, %v1088
    %v1090 = vpop.f32.mrb[0].mxu0
    %v1091 = vadd.f32 %v920, %v1090
    %v1092 = vpop.f32.mrb[0].mxu0
    %v1093 = vadd.f32 %v925, %v1092
    %v1094 = vpop.f32.mrb[0].mxu0
    %v1095 = vadd.f32 %v925, %v1094
    %1096 = vdwg.mxu0
    %v1097 = vmax.f32 %v986, 0.0
    %v1098 = vmax.f32 %v988, 0.0
    %v1099 = vmax.f32 %v1059, 0.0
    %v1100 = vmax.f32 %v1061, 0.0
    %v1101 = vmax.f32 %v990, 0.0
    %v1102 = vmax.f32 %v992, 0.0
    %v1103 = vmax.f32 %v1063, 0.0
    %v1104 = vmax.f32 %v1065, 0.0
    %v1105 = vmax.f32 %v996, 0.0
    %v1106 = vmax.f32 %v998, 0.0
    %v1107 = vmax.f32 %v1069, 0.0
    %v1108 = vmax.f32 %v1071, 0.0
    %v1109 = vmax.f32 %v1000, 0.0
    %v1110 = vmax.f32 %v1002, 0.0
    %v1111 = vmax.f32 %v1073, 0.0
    %v1112 = vmax.f32 %v1075, 0.0
    %v1113 = vmax.f32 %v1006, 0.0
    %v1114 = vmax.f32 %v1008, 0.0
    %v1115 = vmax.f32 %v1079, 0.0
    %v1116 = vmax.f32 %v1081, 0.0
    %v1117 = vmax.f32 %v1010, 0.0
    %v1118 = vmax.f32 %v1012, 0.0
    %v1119 = vmax.f32 %v1083, 0.0
    %v1120 = vmax.f32 %v1085, 0.0
    %v1121 = vmax.f32 %v1016, 0.0
    %v1122 = vmax.f32 %v1018, 0.0
    %v1123 = vmax.f32 %v1089, 0.0
    %v1124 = vmax.f32 %v1091, 0.0
    %v1125 = vmax.f32 %v1020, 0.0
    %v1126 = vmax.f32 %v1022, 0.0
    %v1127 = vmax.f32 %v1093, 0.0
    %v1128 = vmax.f32 %v1095, 0.0
    %v1129 = vld [vmem:[%s5] sm:$0xf]
    %v1130 = vld [vmem:[%s5 + $0x4] sm:$0xf]
    %v1131 = vld [vmem:[%s5 + $0x8] sm:$0xf]
    %v1132 = vld [vmem:[%s5 + $0xc] sm:$0xf]
    %v1133 = vpack.c.bf16 %v1101, %v1097
    %v1134 = vpack.c.bf16 %v1102, %v1098
    %v1135 = vpack.c.bf16 %v1103, %v1099
    %v1136 = vpack.c.bf16 %v1104, %v1100
    %v1137 = vpack.c.bf16 %v1109, %v1105
    %v1138 = vpack.c.bf16 %v1110, %v1106
    %v1139 = vpack.c.bf16 %v1111, %v1107
    %v1140 = vpack.c.bf16 %v1112, %v1108
    %v1141 = vpack.c.bf16 %v1117, %v1113
    %v1142 = vpack.c.bf16 %v1118, %v1114
    %v1143 = vpack.c.bf16 %v1119, %v1115
    %v1144 = vpack.c.bf16 %v1120, %v1116
    %v1145 = vpack.c.bf16 %v1125, %v1121
    %v1146 = vpack.c.bf16 %v1126, %v1122
    %v1147 = vpack.c.bf16 %v1127, %v1123
    %v1148 = vpack.c.bf16 %v1128, %v1124
    %v1149 = vld [vmem:[%s6] sm:$0xff]
    %v1150 = vld [vmem:[%s6 + $0x8] sm:$0xff]
    %v1151 = vld [vmem:[%s6 + $0x10] sm:$0xff]
    %v1152 = vld [vmem:[%s6 + $0x18] sm:$0xff]
    %1154 = vset.pattern.permute.xlu0 0
    %1155 = vperm.xlu0 %1154, %v1149
    %v1156 = vpop.permute.xlu0 %1155
    %1159 = vset.pattern.permute.xlu0 0
    %1160 = vperm.xlu0 %1159, %v1150
    %v1161 = vpop.permute.xlu0 %1160
    %1164 = vset.pattern.permute.xlu0 0
    %1165 = vperm.xlu0 %1164, %v1151
    %v1166 = vpop.permute.xlu0 %1165
    %1169 = vset.pattern.permute.xlu0 0
    %1170 = vperm.xlu0 %1169, %v1152
    %v1171 = vpop.permute.xlu0 %1170
    %v1177 = vunpack.c.l.b16 %v1129
    %v1178 = vunpack.c.l.b16 %v1130
    %v1179 = vunpack.c.l.b16 %v1131
    %v1180 = vunpack.c.l.b16 %v1132
    %v1181 = vpack.c.b16 %v1178, %v1177
    %v1182 = vpack.c.b16 %v1180, %v1179
    %vm1183 = vcmask 523264
    %v1185 = vsel %vm1183, %v1181, 0
    %v1188 = vsel %vm1183, %v1182, 0
    %1190 = vmatprep.subr.bf16.mxu0 %v1134
    %1191 = vmatpush1.bf16.msra.mxu0 %v1133
    %1192 = vmatprep.subr.bf16.mxu0 %v1138
    %1193 = vmatpush1.bf16.msra.mxu0 %v1137
    %1194 = vmatprep.subr.bf16.mxu0 %v1142
    %1195 = vmatpush1.bf16.msra.mxu0 %v1141
    %1196 = vmatprep.subr.bf16.mxu0 %v1146
    %1197 = vmatpush1.bf16.msra.mxu0 %v1145
    %1198 = vmatprep.subr.bf16.mxu0 0
    %1199 = vmatpush1.bf16.msra.mxu0 0
    %1200 = vmatprep.subr.bf16.mxu0 0
    %1201 = vmatpush1.bf16.msra.mxu0 0
    %1202 = vmatprep.subr.bf16.mxu0 0
    %1203 = vmatpush1.bf16.msra.mxu0 0
    %1204 = vmatprep.subr.bf16.mxu0 0
    %1205 = vmatpush1.bf16.msra.mxu0 0
    %1206 = vmatprep.subr.bf16.mxu0 0
    %1207 = vmatpush1.bf16.msra.mxu0 0
    %1208 = vmatprep.subr.bf16.mxu0 0
    %1209 = vmatpush1.bf16.msra.mxu0 0
    %1210 = vmatprep.subr.bf16.mxu0 0
    %1211 = vmatpush1.bf16.msra.mxu0 0
    %1212 = vmatprep.subr.bf16.mxu0 0
    %1213 = vmatpush1.bf16.msra.mxu0 0
    %1214 = vmatprep.subr.bf16.mxu0 0
    %1215 = vmatpush1.bf16.msra.mxu0 0
    %1216 = vmatprep.subr.bf16.mxu0 0
    %1217 = vmatpush1.bf16.msra.mxu0 0
    %1218 = vmatprep.subr.bf16.mxu0 0
    %1219 = vmatpush1.bf16.msra.mxu0 0
    %1220 = vmatprep.subr.bf16.mxu0 0
    %1221 = vmatpush1.bf16.msra.mxu0 0
    %1222 = vmatprep.mubr.bf16.mxu0 0
    %1223 = vmatmul.mubr.bf16.gmra.mrb[0].mxu0 %v1185
    %v1224 = vpop.f32.mrb[0].mxu0
    %v1225 = vadd.f32 %v1156, %v1224
    %v1226 = vpop.f32.mrb[0].mxu0
    %v1227 = vadd.f32 %v1156, %v1226
    %v1228 = vpop.f32.mrb[0].mxu0
    %v1229 = vadd.f32 %v1161, %v1228
    %v1230 = vpop.f32.mrb[0].mxu0
    %v1231 = vadd.f32 %v1161, %v1230
    %1232 = vmatprep.mubr.bf16.mxu0 0
    %1233 = vmatmul.mubr.bf16.gmra.mrb[0].mxu0 %v1188
    %v1234 = vpop.f32.mrb[0].mxu0
    %v1235 = vadd.f32 %v1166, %v1234
    %v1236 = vpop.f32.mrb[0].mxu0
    %v1237 = vadd.f32 %v1166, %v1236
    %v1238 = vpop.f32.mrb[0].mxu0
    %v1239 = vadd.f32 %v1171, %v1238
    %v1240 = vpop.f32.mrb[0].mxu0
    %v1241 = vadd.f32 %v1171, %v1240
    %1242 = vdwg.mxu0
    %1243 = vmatprep.subr.bf16.mxu0 %v1136
    %1244 = vmatpush1.bf16.msra.mxu0 %v1135
    %1245 = vmatprep.subr.bf16.mxu0 %v1140
    %1246 = vmatpush1.bf16.msra.mxu0 %v1139
    %1247 = vmatprep.subr.bf16.mxu0 %v1144
    %1248 = vmatpush1.bf16.msra.mxu0 %v1143
    %1249 = vmatprep.subr.bf16.mxu0 %v1148
    %1250 = vmatpush1.bf16.msra.mxu0 %v1147
    %1251 = vmatprep.subr.bf16.mxu0 0
    %1252 = vmatpush1.bf16.msra.mxu0 0
    %1253 = vmatprep.subr.bf16.mxu0 0
    %1254 = vmatpush1.bf16.msra.mxu0 0
    %1255 = vmatprep.subr.bf16.mxu0 0
    %1256 = vmatpush1.bf16.msra.mxu0 0
    %1257 = vmatprep.subr.bf16.mxu0 0
    %1258 = vmatpush1.bf16.msra.mxu0 0
    %1259 = vmatprep.subr.bf16.mxu0 0
    %1260 = vmatpush1.bf16.msra.mxu0 0
    %1261 = vmatprep.subr.bf16.mxu0 0
    %1262 = vmatpush1.bf16.msra.mxu0 0
    %1263 = vmatprep.subr.bf16.mxu0 0
    %1264 = vmatpush1.bf16.msra.mxu0 0
    %1265 = vmatprep.subr.bf16.mxu0 0
    %1266 = vmatpush1.bf16.msra.mxu0 0
    %1267 = vmatprep.subr.bf16.mxu0 0
    %1268 = vmatpush1.bf16.msra.mxu0 0
    %1269 = vmatprep.subr.bf16.mxu0 0
    %1270 = vmatpush1.bf16.msra.mxu0 0
    %1271 = vmatprep.subr.bf16.mxu0 0
    %1272 = vmatpush1.bf16.msra.mxu0 0
    %1273 = vmatprep.subr.bf16.mxu0 0
    %1274 = vmatpush1.bf16.msra.mxu0 0
    %1275 = vmatprep.mubr.bf16.mxu0 0
    %1276 = vmatmul.mubr.bf16.gmra.mrb[0].mxu0 %v1185
    %v1277 = vpop.f32.mrb[0].mxu0
    %v1278 = vadd.f32 %v1156, %v1277
    %v1279 = vpop.f32.mrb[0].mxu0
    %v1280 = vadd.f32 %v1156, %v1279
    %v1281 = vpop.f32.mrb[0].mxu0
    %v1282 = vadd.f32 %v1161, %v1281
    %v1283 = vpop.f32.mrb[0].mxu0
    %v1284 = vadd.f32 %v1161, %v1283
    %1285 = vmatprep.mubr.bf16.mxu0 0
    %1286 = vmatmul.mubr.bf16.gmra.mrb[0].mxu0 %v1188
    %v1287 = vpop.f32.mrb[0].mxu0
    %v1288 = vadd.f32 %v1166, %v1287
    %v1289 = vpop.f32.mrb[0].mxu0
    %v1290 = vadd.f32 %v1166, %v1289
    %v1291 = vpop.f32.mrb[0].mxu0
    %v1292 = vadd.f32 %v1171, %v1291
    %v1293 = vpop.f32.mrb[0].mxu0
    %v1294 = vadd.f32 %v1171, %v1293
    %1295 = vdwg.mxu0
    %v1296 = vmax.f32 %v1225, 0.0
    %v1297 = vmax.f32 %v1227, 0.0
    %v1298 = vmax.f32 %v1278, 0.0
    %v1299 = vmax.f32 %v1280, 0.0
    %v1300 = vmax.f32 %v1229, 0.0
    %v1301 = vmax.f32 %v1231, 0.0
    %v1302 = vmax.f32 %v1282, 0.0
    %v1303 = vmax.f32 %v1284, 0.0
    %v1304 = vmax.f32 %v1235, 0.0
    %v1305 = vmax.f32 %v1237, 0.0
    %v1306 = vmax.f32 %v1288, 0.0
    %v1307 = vmax.f32 %v1290, 0.0
    %v1308 = vmax.f32 %v1239, 0.0
    %v1309 = vmax.f32 %v1241, 0.0
    %v1310 = vmax.f32 %v1292, 0.0
    %v1311 = vmax.f32 %v1294, 0.0
    %v1312 = vld [vmem:[%s7] sm:$0xff]
    %v1313 = vld [vmem:[%s7 + $0x8] sm:$0xff]
    %v1314 = vld [vmem:[%s7 + $0x10] sm:$0xff]
    %v1315 = vld [vmem:[%s7 + $0x18] sm:$0xff]
    %1317 = vset.pattern.permute.xlu0 0
    %1318 = vperm.xlu0 %1317, %v1312
    %v1319 = vpop.permute.xlu0 %1318
    %1322 = vset.pattern.permute.xlu0 0
    %1323 = vperm.xlu0 %1322, %v1313
    %v1324 = vpop.permute.xlu0 %1323
    %1327 = vset.pattern.permute.xlu0 0
    %1328 = vperm.xlu0 %1327, %v1314
    %v1329 = vpop.permute.xlu0 %1328
    %1332 = vset.pattern.permute.xlu0 0
    %1333 = vperm.xlu0 %1332, %v1315
    %v1334 = vpop.permute.xlu0 %1333
    %v1336 = vmul.f32 %v1319, %v1296
    %v1337 = vmul.f32 %v1319, %v1297
    %v1338 = vmul.f32 %v1319, %v1298
    %v1339 = vmul.f32 %v1319, %v1299
    %v1340 = vmul.f32 %v1324, %v1300
    %v1341 = vmul.f32 %v1324, %v1301
    %v1342 = vmul.f32 %v1324, %v1302
    %v1343 = vmul.f32 %v1324, %v1303
    %v1344 = vmul.f32 %v1329, %v1304
    %v1345 = vmul.f32 %v1329, %v1305
    %v1346 = vmul.f32 %v1329, %v1306
    %v1347 = vmul.f32 %v1329, %v1307
    %v1348 = vmul.f32 %v1334, %v1308
    %v1349 = vmul.f32 %v1334, %v1309
    %v1350 = vmul.f32 %v1334, %v1310
    %v1351 = vmul.f32 %v1334, %v1311
    %v1352 = vadd.f32 %v1336, %v1340
    %v1353 = vadd.f32 %v1352, %v1344
    %v1354 = vadd.f32 %v1353, %v1348
    %v1355 = vrot.slane %v1354, 4
    %v1356 = vadd.f32 %v1354, %v1355
    %v1357 = vrot.slane %v1356, 2
    %v1358 = vadd.f32 %v1356, %v1357
    %v1359 = vrot.slane %v1358, 1
    %v1360 = vadd.f32 %v1358, %v1359
    %v1361 = vadd.f32 %v1337, %v1341
    %v1362 = vadd.f32 %v1361, %v1345
    %v1363 = vadd.f32 %v1362, %v1349
    %v1364 = vrot.slane %v1363, 4
    %v1365 = vadd.f32 %v1363, %v1364
    %v1366 = vrot.slane %v1365, 2
    %v1367 = vadd.f32 %v1365, %v1366
    %v1368 = vrot.slane %v1367, 1
    %v1369 = vadd.f32 %v1367, %v1368
    %v1370 = vadd.f32 %v1338, %v1342
    %v1371 = vadd.f32 %v1370, %v1346
    %v1372 = vadd.f32 %v1371, %v1350
    %v1373 = vrot.slane %v1372, 4
    %v1374 = vadd.f32 %v1372, %v1373
    %v1375 = vrot.slane %v1374, 2
    %v1376 = vadd.f32 %v1374, %v1375
    %v1377 = vrot.slane %v1376, 1
    %v1378 = vadd.f32 %v1376, %v1377
    %v1379 = vadd.f32 %v1339, %v1343
    %v1380 = vadd.f32 %v1379, %v1347
    %v1381 = vadd.f32 %v1380, %v1351
    %v1382 = vrot.slane %v1381, 4
    %v1383 = vadd.f32 %v1381, %v1382
    %v1384 = vrot.slane %v1383, 2
    %v1385 = vadd.f32 %v1383, %v1384
    %v1386 = vrot.slane %v1385, 1
    %v1387 = vadd.f32 %v1385, %v1386
    %v1388 = vld [vmem:[#allocation2] sm:$0x1]
    %1390 = vset.pattern.permute.xlu0 0
    %1391 = vperm.xlu0 %1390, %v1388
    %v1392 = vpop.permute.xlu0 %1391
    %v1394 = vlaneseq
    %v1395 = vshrl.u32 %v1394, 7
    %v1396 = vsub.s32 0, %v1395
    %v1397 = vrot.slane %v1392, %v1396
    %v1398 = vadd.f32 %v1360, %v1397
    %v1399 = vadd.f32 %v1369, %v1397
    %v1400 = vadd.f32 %v1378, %v1397
    %v1401 = vadd.f32 %v1387, %v1397
    %v1402 = vmax.f32 %v1398, 0.0
    %v1403 = vmax.f32 %v1399, 0.0
    %v1404 = vmax.f32 %v1400, 0.0
    %v1405 = vmax.f32 %v1401, 0.0
    %v1410 = vcombine.low %v1402, %v1403
    %v1411 = vcombine.low %v1404, %v1405
    %v1413 = vunpack.c.l.s4 1966171168
    %v1414 = vunpack.c.0.s8 %v1413
    %v1415 = vlaneseq
    %v1416 = vshrl.u32 %v1415, 7
    %v1417 = vsub.s32 %v1414, %v1416
    %v1418 = vrot.slane %v1410, %v1417
    %v1420 = vunpack.c.l.s4 1966171168
    %v1421 = vunpack.c.0.s8 %v1420
    %v1422 = vlaneseq
    %v1423 = vshrl.u32 %v1422, 7
    %v1424 = vsub.s32 %v1421, %v1423
    %v1425 = vrot.slane %v1411, %v1424
    %v1426 = vcombine.low %v1418, %v1425
    %v1428 = vunpack.c.l.s4 1966171168
    %v1429 = vunpack.c.0.s8 %v1428
    %v1430 = vlaneseq
    %v1431 = vshrl.u32 %v1430, 7
    %v1432 = vsub.s32 %v1429, %v1431
    %v1433 = vrot.slane %v1426, %v1432
    %v1435 = vlaneseq
    %vm1436 = vcmp.ge.s32.totalorder %v1435, 0
    %vm1437 = vcmp.lt.s32.totalorder %v1435, 512
    %vm1438 = vmand %vm1436, %vm1437
    %1439 = vst.msk [vmem:[#allocation3] sm:$0xf] %vm1438, %v1433
    // Predicated region
    $region38: #{freight_cost_predictor.1} parent=1 // pred_check
      _
    $region39: #{freight_cost_predictor.1} parent=1 // pred_check_branch
      %1441 = sbr.rel (0) target = $region41
    $region40: #{freight_cost_predictor.1} parent=1 // pred_region
      %s1443 = ssub.s32 64, 64
      %1444 = vsyncadd [#allocation4], %s1443
      %s1446 = sshll.u32 [#allocation3], 4
      %s1447 = int_to_ptr.vmem [resolvable:$true] %s1446
      %1449 = dma.vmem_to_hbm [thread:$0]  %s1447, 64, %s9, [#allocation4]
    $region41: #{freight_cost_predictor.1} parent=1 // pred_fallthru
      _
    // Predicated region
    $region42: #{freight_cost_predictor.1} parent=1 // pred_check
      _
    $region43: #{freight_cost_predictor.1} parent=1 // pred_check_branch
      %1451 = sbr.rel (0) target = $region45
    $region44: #{freight_cost_predictor.1} parent=1 // pred_region
      %1452 = dma.done [#allocation4], 64
    $region45: #{freight_cost_predictor.1} parent=1 // pred_fallthru
      _
    %1453 = vsyncpa [#allocation4], 1

</llo_original>
